<compile_context>
chip_gen: v5e
topology: v5e:2x2
jax: 0.10.0
libtpu: 0.0.40
codegen_flags: <defaults>
</compile_context>

<pallas_src>
import functools

import jax
import jax.numpy as jnp
from jax import lax
from jax.experimental import pallas as pl
from jax.experimental.pallas import tpu as pltpu


def _margin_loss_kernel(logits_ref, loss_out_ref, count_out_ref,
                        loss_acc, count_acc,
                        *, tau, lambda_entropy, batch_size, block_rows,
                        n_inner, needs_mask):
    j = pl.program_id(1)                      # inner ("arbitrary") reduction axis

    @pl.when(j == 0)
    def _init():
        loss_acc[0] = jnp.float32(0.0)
        count_acc[0] = jnp.float32(0.0)

    x = logits_ref[...].astype(jnp.float32)   # (TB, C)
    tb, c = x.shape

    if needs_mask:
        # Only emitted when the padded grid does not exactly tile B.  Rows past
        # the true batch (partial tile padding or clamped duplicate tiles) are
        # zeroed so HBM garbage can't poison the reductions, and their
        # contributions are masked out below.
        i = pl.program_id(0)
        tile_idx = i * n_inner + j
        row = lax.broadcasted_iota(jnp.int32, (tb, 1), 0)
        valid = (tile_idx * block_rows + row) < batch_size      # (TB, 1) bool
        x = jnp.where(valid, x, 0.0)

    # Numerically stable softmax pieces — probs are never materialized.
    m = jnp.max(x, axis=1, keepdims=True)                       # (TB, 1)
    xm = x - m
    e = jnp.exp(xm)                                             # one EUP op / element
    sum_e = jnp.sum(e, axis=1, keepdims=True)                   # (TB, 1)
    inv_sum = 1.0 / sum_e                                       # exact; (TB,1) only

    # unknown = probs[:, -1]; margin = known - unknown = 1 - 2*unknown.
    unknown = e[:, c - 1:c] * inv_sum                           # (TB, 1)
    margin = 1.0 - 2.0 * unknown

    # entropy = -sum(p*log p) = log(sum_e) - sum(e*(x-m)) / sum_e
    entropy = jnp.log(sum_e) - jnp.sum(e * xm, axis=1, keepdims=True) * inv_sum

    per_row = jnp.maximum(tau - margin, 0.0) + lambda_entropy * entropy
    below = (margin < tau).astype(jnp.float32)

    if needs_mask:
        validf = valid.astype(jnp.float32)
        per_row = per_row * validf
        below = below * validf

    loss_acc[0] += jnp.sum(per_row)
    count_acc[0] += jnp.sum(below)

    # TODO(synk): wandb.log({'entropy': ..., 'margin': ...}) is a host-side
    # logging side effect with no Pallas equivalent; omitted.

    @pl.when(j == pl.num_programs(1) - 1)
    def _finalize():
        # Per-parallel-chunk partial sums, broadcast into a lane-dense
        # (1, 8, 128) output block; the wrapper reads [chunk, 0, 0].
        loss_out_ref[...] = jnp.full(loss_out_ref.shape, loss_acc[0],
                                     dtype=jnp.float32)
        count_out_ref[...] = jnp.full(count_out_ref.shape, count_acc[0],
                                      dtype=jnp.float32)


def _pick_block_rows(batch, classes, dtype):
    """Batch-tile rows sized by *VMEM-padded* bytes: ~8 MiB per input buffer,
    so 2x double-buffering stays ~16 MiB (fits v5e/v6e/v7x scoped VMEM with
    the explicit vmem_limit_bytes below).  No artificial row cap."""
    itemsize = jnp.dtype(dtype).itemsize
    sublane = 16 if itemsize == 2 else 8              # bf16 packs 16 rows / vreg
    padded_c = ((classes + 127) // 128) * 128         # lane-padded width in VMEM
    bytes_per_row = padded_c * itemsize
    budget = 8 * 1024 * 1024                          # per input buffer
    tb = budget // max(1, bytes_per_row)
    tb = max(sublane, (tb // sublane) * sublane)
    if batch <= tb:
        return batch                                  # single full-array block
    return tb


def _margin_loss_pallas(logits, tau, lambda_entropy, block_rows=None):
    """Returns (total_loss scalar f32, count_below_tau scalar i32), on device."""
    B, C = logits.shape
    if block_rows is None:
        tb = _pick_block_rows(B, C, logits.dtype)
    else:
        tb = min(int(block_rows), B)

    n_tiles = pl.cdiv(B, tb)
    # Outer "parallel" axis: lets v7x's 2 TensorCores each stream half the
    # batch (near-free on single-TC v5e/v6e).
    n_outer = 2 if n_tiles >= 2 else 1
    n_inner = pl.cdiv(n_tiles, n_outer)
    needs_mask = (n_outer * n_inner * tb != B)

    if n_outer * n_inner == n_tiles:
        def in_map(i, j):
            return (i * n_inner + j, 0)
    else:
        # Grid over-covers the tile count by at most one step per chunk; clamp
        # the block index (data re-read is fully masked out in the kernel).
        def in_map(i, j):
            return (jnp.minimum(i * n_inner + j, n_tiles - 1), 0)

    kernel = functools.partial(
        _margin_loss_kernel,
        tau=float(tau),
        lambda_entropy=float(lambda_entropy),
        batch_size=B,
        block_rows=tb,
        n_inner=n_inner,
        needs_mask=needs_mask,
    )

    loss_p, count_p = pl.pallas_call(
        kernel,
        out_shape=(
            jax.ShapeDtypeStruct((n_outer, 8, 128), jnp.float32),
            jax.ShapeDtypeStruct((n_outer, 8, 128), jnp.float32),
        ),
        grid=(n_outer, n_inner),
        in_specs=[pl.BlockSpec((tb, C), in_map)],
        out_specs=(
            pl.BlockSpec((1, 8, 128), lambda i, j: (i, 0, 0)),
            pl.BlockSpec((1, 8, 128), lambda i, j: (i, 0, 0)),
        ),
        scratch_shapes=[
            pltpu.SMEM((1,), jnp.float32),   # running loss sum (per chunk)
            pltpu.SMEM((1,), jnp.float32),   # running (margin < tau) count
        ],
        compiler_params=pltpu.CompilerParams(
            dimension_semantics=("parallel", "arbitrary"),
            vmem_limit_bytes=32 * 1024 * 1024,
        ),
    )(logits)

    total_loss = jnp.sum(loss_p[:, 0, 0]) / jnp.float32(B)
    count = jnp.sum(count_p[:, 0, 0]).astype(jnp.int32)
    return total_loss, count


def _margin_loss_reference(logits, tau, lambda_entropy):
    """Pure-JAX port of the PyTorch math (keeps the +1e-6 inside the log)."""
    x = logits.astype(jnp.float32)
    probs = jax.nn.softmax(x, axis=1)
    known = jnp.sum(probs[:, :-1], axis=1)
    unknown = probs[:, -1]
    margin = known - unknown
    count = jnp.sum(margin < tau).astype(jnp.int32)
    entropy = -jnp.sum(probs * jnp.log(probs + 1e-6), axis=1).mean()
    margin_loss = jnp.mean(jax.nn.relu(tau - margin))
    return margin_loss + lambda_entropy * entropy, count


class MarginLoss:
    """JAX/Pallas port of the PyTorch MarginLoss module."""

    def __init__(self, tau=0.5, lambda_entropy=0.1):
        self.tau = tau
        self.lambda_entropy = lambda_entropy

    def __call__(self, logits, uncertainties):
        if isinstance(logits, list):
            results = [self.calculate_margin_loss(l, uncertainties) for l in logits]
            losses, uncs = zip(*results)
            return (sum(losses) / len(losses), sum(uncs) / len(uncs))
        return self.calculate_margin_loss(logits, uncertainties)

    def calculate_margin_loss(self, logits, uncertainties):
        total_loss, count = _margin_loss_pallas(logits, self.tau, self.lambda_entropy)
        # PyTorch uses `.item()` (blocking host sync).  Keep the count as a
        # device scalar instead — no device->host round-trip per call.
        return (total_loss, uncertainties + count)


if __name__ == "__main__":
    key = jax.random.PRNGKey(0)
    B, C = 8, 32  # 31 "known" classes + 1 "unknown" class on the last column
    logits = jax.random.normal(key, (B, C), dtype=jnp.float32)

    loss_fn = MarginLoss(tau=0.5, lambda_entropy=0.1)

    # single-tensor path + reference check
    total_loss, uncertainties = loss_fn(logits, 0)
    ref_loss, ref_count = _margin_loss_reference(logits, 0.5, 0.1)
    assert jnp.allclose(total_loss, ref_loss, rtol=2e-4, atol=1e-5)
    assert int(uncertainties) == int(ref_count)

    # list-of-logits path (no host syncs between launches)
    k1, k2 = jax.random.split(key)
    logits_list = [
        jax.random.normal(k1, (B, C), dtype=jnp.float32),
        jax.random.normal(k2, (B, C), dtype=jnp.float32),
    ]
    avg_loss, avg_unc = loss_fn(logits_list, 0)

    # bf16 input, batch not a multiple of 8 (block == full array is legal)
    k3, _ = jax.random.split(k1)
    logits_bf16 = jax.random.normal(k3, (12, C), dtype=jnp.bfloat16)
    bf16_loss, bf16_unc = loss_fn(logits_bf16, 0)

    # forced small tiles: exercises the 2-D (parallel, arbitrary) grid, the
    # clamped index map, and the partial-tile masking path.
    k4 = jax.random.PRNGKey(4)
    logits_big = jax.random.normal(k4, (20, C), dtype=jnp.float32)
    t_loss, t_count = _margin_loss_pallas(logits_big, 0.5, 0.1, block_rows=8)
    r_loss, r_count = _margin_loss_reference(logits_big, 0.5, 0.1)
    assert jnp.allclose(t_loss, r_loss, rtol=2e-4, atol=1e-5)
    assert int(t_count) == int(r_count)

    jax.block_until_ready(
        (total_loss, uncertainties, avg_loss, avg_unc,
         bf16_loss, bf16_unc, t_loss, t_count))

    print("KERNEL_OK")
</pallas_src>

<mosaic_0001>
module attributes {stable_mosaic.version = 11 : i64} {
  func.func @_margin_loss_kernel(%arg0: i32, %arg1: i32, %arg2: memref<8x32xf32, #tpu.memory_space<vmem>>, %arg3: memref<1x8x128xf32, #tpu.memory_space<vmem>>, %arg4: memref<1x8x128xf32, #tpu.memory_space<vmem>>, %arg5: memref<1xf32, #tpu.memory_space<smem>>, %arg6: memref<1xf32, #tpu.memory_space<smem>>) attributes {dimension_semantics = [#tpu.dimension_semantics<parallel>, #tpu.dimension_semantics<arbitrary>], iteration_bounds = array<i64: 1, 1>, scalar_prefetch = 0 : i64, scratch_operands = 2 : i64, tpu.core_type = #tpu.core_type<tc>, window_params = [{transform_indices = @transform_0, window_bounds = array<i64: 8, 32>}, {transform_indices = @transform_1, window_bounds = array<i64: 1, 8, 128>}, {transform_indices = @transform_2, window_bounds = array<i64: 1, 8, 128>}]} {
    %c0_i32 = arith.constant 0 : i32
    %0 = arith.cmpi eq, %arg1, %c0_i32 : i32
    %1 = arith.extui %0 : i1 to i32
    %c0_i32_0 = arith.constant 0 : i32
    %2 = arith.cmpi ne, %1, %c0_i32_0 : i32
    scf.if %2 {
      %cst_19 = arith.constant 0.000000e+00 : f32
      %c0_20 = arith.constant 0 : index
      %53 = memref.load %arg5[%c0_20] : memref<1xf32, #tpu.memory_space<smem>>
      memref.store %cst_19, %arg5[%c0_20] : memref<1xf32, #tpu.memory_space<smem>>
      %cst_21 = arith.constant 0.000000e+00 : f32
      %c0_22 = arith.constant 0 : index
      %54 = memref.load %arg6[%c0_22] : memref<1xf32, #tpu.memory_space<smem>>
      memref.store %cst_21, %arg6[%c0_22] : memref<1xf32, #tpu.memory_space<smem>>
    } else {
    }
    %c0 = arith.constant 0 : index
    %c0_1 = arith.constant 0 : index
    %3 = vector.load %arg2[%c0, %c0_1] : memref<8x32xf32, #tpu.memory_space<vmem>>, vector<8x32xf32>
    %cst = arith.constant dense<0xFF800000> : vector<8xf32>
    %4 = vector.multi_reduction <maximumf>, %3, %cst [1] : vector<8x32xf32> to vector<8xf32>
    %5 = vector.shape_cast %4 : vector<8xf32> to vector<8x1xf32>
    %6 = vector.broadcast %5 : vector<8x1xf32> to vector<8x32xf32>
    %7 = arith.subf %3, %6 : vector<8x32xf32>
    %8 = math.exp %7 : vector<8x32xf32>
    %cst_2 = arith.constant dense<0.000000e+00> : vector<8xf32>
    %9 = vector.multi_reduction <add>, %8, %cst_2 [1] : vector<8x32xf32> to vector<8xf32>
    %10 = vector.shape_cast %9 : vector<8xf32> to vector<8x1xf32>
    %cst_3 = arith.constant 1.000000e+00 : f32
    %11 = vector.broadcast %cst_3 : f32 to vector<8x1xf32>
    %12 = arith.divf %11, %10 : vector<8x1xf32>
    %13 = vector.extract_strided_slice %8 {offsets = [0, 31], sizes = [8, 1], strides = [1, 1]} : vector<8x32xf32> to vector<8x1xf32>
    %14 = arith.mulf %13, %12 : vector<8x1xf32>
    %cst_4 = arith.constant 2.000000e+00 : f32
    %15 = vector.broadcast %cst_4 : f32 to vector<8x1xf32>
    %16 = arith.mulf %15, %14 : vector<8x1xf32>
    %cst_5 = arith.constant 1.000000e+00 : f32
    %17 = vector.broadcast %cst_5 : f32 to vector<8x1xf32>
    %18 = arith.subf %17, %16 : vector<8x1xf32>
    %19 = math.log %10 : vector<8x1xf32>
    %20 = arith.mulf %8, %7 : vector<8x32xf32>
    %cst_6 = arith.constant dense<0.000000e+00> : vector<8xf32>
    %21 = vector.multi_reduction <add>, %20, %cst_6 [1] : vector<8x32xf32> to vector<8xf32>
    %22 = vector.shape_cast %21 : vector<8xf32> to vector<8x1xf32>
    %23 = arith.mulf %22, %12 : vector<8x1xf32>
    %24 = arith.subf %19, %23 : vector<8x1xf32>
    %cst_7 = arith.constant 5.000000e-01 : f32
    %25 = vector.broadcast %cst_7 : f32 to vector<8x1xf32>
    %26 = arith.subf %25, %18 : vector<8x1xf32>
    %cst_8 = arith.constant 0.000000e+00 : f32
    %27 = vector.broadcast %cst_8 : f32 to vector<8x1xf32>
    %28 = arith.maximumf %26, %27 : vector<8x1xf32>
    %cst_9 = arith.constant 1.000000e-01 : f32
    %29 = vector.broadcast %cst_9 : f32 to vector<8x1xf32>
    %30 = arith.mulf %29, %24 : vector<8x1xf32>
    %31 = arith.addf %28, %30 : vector<8x1xf32>
    %cst_10 = arith.constant 5.000000e-01 : f32
    %32 = vector.broadcast %cst_10 : f32 to vector<8x1xf32>
    %33 = arith.cmpf olt, %18, %32 : vector<8x1xf32>
    %34 = arith.extui %33 : vector<8x1xi1> to vector<8x1xi32>
    %35 = arith.sitofp %34 : vector<8x1xi32> to vector<8x1xf32>
    %c0_11 = arith.constant 0 : index
    %36 = memref.load %arg5[%c0_11] : memref<1xf32, #tpu.memory_space<smem>>
    %37 = vector.shape_cast %31 : vector<8x1xf32> to vector<1x8x1xf32>
    %cst_12 = arith.constant dense<0.000000e+00> : vector<1xf32>
    %38 = vector.multi_reduction <add>, %37, %cst_12 [1, 2] : vector<1x8x1xf32> to vector<1xf32>
    %39 = vector.shape_cast %38 : vector<1xf32> to vector<1x1x1xf32>
    %40 = vector.extract %39[0, 0, 0] : f32 from vector<1x1x1xf32>
    %41 = arith.addf %36, %40 : f32
    %c0_13 = arith.constant 0 : index
    %42 = memref.load %arg5[%c0_13] : memref<1xf32, #tpu.memory_space<smem>>
    memref.store %41, %arg5[%c0_13] : memref<1xf32, #tpu.memory_space<smem>>
    %c0_14 = arith.constant 0 : index
    %43 = memref.load %arg6[%c0_14] : memref<1xf32, #tpu.memory_space<smem>>
    %44 = vector.shape_cast %35 : vector<8x1xf32> to vector<1x8x1xf32>
    %cst_15 = arith.constant dense<0.000000e+00> : vector<1xf32>
    %45 = vector.multi_reduction <add>, %44, %cst_15 [1, 2] : vector<1x8x1xf32> to vector<1xf32>
    %46 = vector.shape_cast %45 : vector<1xf32> to vector<1x1x1xf32>
    %47 = vector.extract %46[0, 0, 0] : f32 from vector<1x1x1xf32>
    %48 = arith.addf %43, %47 : f32
    %c0_16 = arith.constant 0 : index
    %49 = memref.load %arg6[%c0_16] : memref<1xf32, #tpu.memory_space<smem>>
    memref.store %48, %arg6[%c0_16] : memref<1xf32, #tpu.memory_space<smem>>
    %c0_i32_17 = arith.constant 0 : i32
    %50 = arith.cmpi eq, %arg1, %c0_i32_17 : i32
    %51 = arith.extui %50 : i1 to i32
    %c0_i32_18 = arith.constant 0 : i32
    %52 = arith.cmpi ne, %51, %c0_i32_18 : i32
    scf.if %52 {
      %c0_19 = arith.constant 0 : index
      %53 = memref.load %arg5[%c0_19] : memref<1xf32, #tpu.memory_space<smem>>
      %54 = vector.broadcast %53 : f32 to vector<1x8x128xf32>
      %c0_20 = arith.constant 0 : index
      %c0_21 = arith.constant 0 : index
      %c0_22 = arith.constant 0 : index
      %55 = vector.load %arg3[%c0_20, %c0_21, %c0_22] : memref<1x8x128xf32, #tpu.memory_space<vmem>>, vector<1x8x128xf32>
      tpu.vector_store %arg3[%c0_20, %c0_21, %c0_22], %54 {strides = array<i32>} : memref<1x8x128xf32, #tpu.memory_space<vmem>>, vector<1x8x128xf32>,
      %c0_23 = arith.constant 0 : index
      %56 = memref.load %arg6[%c0_23] : memref<1xf32, #tpu.memory_space<smem>>
      %57 = vector.broadcast %56 : f32 to vector<1x8x128xf32>
      %c0_24 = arith.constant 0 : index
      %c0_25 = arith.constant 0 : index
      %c0_26 = arith.constant 0 : index
      %58 = vector.load %arg4[%c0_24, %c0_25, %c0_26] : memref<1x8x128xf32, #tpu.memory_space<vmem>>, vector<1x8x128xf32>
      tpu.vector_store %arg4[%c0_24, %c0_25, %c0_26], %57 {strides = array<i32>} : memref<1x8x128xf32, #tpu.memory_space<vmem>>, vector<1x8x128xf32>,
    } else {
    }
    return
  }
  func.func @transform_0(%arg0: i32, %arg1: i32) -> (i32, i32) {
    %c1_i32 = arith.constant 1 : i32
    %0 = arith.muli %arg0, %c1_i32 : i32
    %1 = arith.addi %0, %arg1 : i32
    %c0_i32 = arith.constant 0 : i32
    %c0_i32_0 = arith.constant 0 : i32
    return %1, %c0_i32 : i32, i32
  }
  func.func @transform_1(%arg0: i32, %arg1: i32) -> (i32, i32, i32) {
    %c0_i32 = arith.constant 0 : i32
    %c0_i32_0 = arith.constant 0 : i32
    %c0_i32_1 = arith.constant 0 : i32
    return %arg0, %c0_i32, %c0_i32_0 : i32, i32, i32
  }
  func.func @transform_2(%arg0: i32, %arg1: i32) -> (i32, i32, i32) {
    %c0_i32 = arith.constant 0 : i32
    %c0_i32_0 = arith.constant 0 : i32
    %c0_i32_1 = arith.constant 0 : i32
    return %arg0, %c0_i32, %c0_i32_0 : i32, i32, i32
  }
}

</mosaic_0001>

<llo_original>
// kernel: tpu_custom_call.1
$region0: #{tpu_custom_call.1}
  #allocation0 [shape = 'u32[]', space=smem, size = 0x4, offset = 0x4, fixed_abs, tag = 'smem constant byte address 0x4 - core index']
  #allocation1 [shape = 'u32[72,128]{1,0:T(1,128)}', space=vmem, size = 0x9000, scoped, tag = 'internal scratch']
  #allocation2 [shape = 'f32[1]{0:T(128)}', space=smem, size = 0x200, scoped, tag = 'scratch operand']
  #allocation3 [shape = 'f32[1]{0:T(128)}', space=smem, size = 0x200, scoped, tag = 'scratch operand']
  %s0 = inlined_call_operand.hbm [shape: f32[8,32], index: 0, kind: input, shape index: {}]
  %s1 = inlined_call_operand.hbm [shape: f32[1,8,128], index: 1, kind: output, shape index: {0}]
  %s2 = inlined_call_operand.hbm [shape: f32[1,8,128], index: 2, kind: output, shape index: {1}]
  %3 = xla_tuple %s1, %s2
  %s4 = sld [smem:[#allocation0]]
  $region34: #{tpu_custom_call.1} parent=0
    _
  %s6 = ssub.s32 1, %s4
  %s7 = scalar_select 0, %s6, %s4
  $region1: #{tpu_custom_call.1} parent=0
    #allocation4 [shape = 'u8[4096]{0}', space=vmem, size = 0x1000, scoped, tag = 'input window, operand 0, single buffered']
    #allocation5 [shape = 's32[1]{0}', space=sflag, size = 0x4, scoped, tag = 'scoped memory for tpu_custom_call.1']
    #allocation6 [shape = 's32[1]{0}', space=sflag, size = 0x4, scoped, tag = 'scoped memory for tpu_custom_call.1']
    #allocation7 [shape = 'u8[4096]{0}', space=vmem, size = 0x1000, scoped, tag = 'output window, operand 0, single buffered']
    #allocation8 [shape = 'u8[4096]{0}', space=vmem, size = 0x1000, scoped, tag = 'output window, operand 1, single buffered']
    #allocation9 [shape = 's32[1]{0}', space=sflag, size = 0x4, scoped, tag = 'scoped memory for tpu_custom_call.1']
    %8 = vsyncpa [#allocation5], 0
    %9 = vsyncpa [#allocation6], 0
    %10 = vsyncpa [#allocation9], 0
    // Predicated region
    $region2: #{tpu_custom_call.1} parent=1 // pred_check
      _
    $region3: #{tpu_custom_call.1} parent=1 // pred_check_branch
      %12 = sbr.rel (0) target = $region5
    $region4: #{tpu_custom_call.1} parent=1 // pred_region
      %s13 = sadd.s32 0, 0
      %15 = vsyncadd [#allocation5], 0
      %s16 = smul.addr %s13, 8
      %s17 = scalar_lea.hbm %s0, %s16
      %s19 = sshll.u32 %s17, 4
      %s20 = int_to_ptr.hbm [resolvable:$true] %s19
      %s21 = sshll.u32 [#allocation4], 4
      %s22 = int_to_ptr.vmem [resolvable:$true] %s21
      %24 = dma.hbm_to_vmem [thread:$0]  %s20, 128, %s22, [#allocation5]
    $region5: #{tpu_custom_call.1} parent=1 // pred_fallthru
      _
    // Predicated region
    $region6: #{tpu_custom_call.1} parent=1 // pred_check
      _
    $region7: #{tpu_custom_call.1} parent=1 // pred_check_branch
      %26 = sbr.rel (0) target = $region9
    $region8: #{tpu_custom_call.1} parent=1 // pred_region
      %28 = dma.done [#allocation5], 128
    $region9: #{tpu_custom_call.1} parent=1 // pred_fallthru
      _
    %s29 = sadd.s32 0, 0
    %p30 = scmp.eq.s32.totalorder 0, 0
    // Predicated region
    $region10: #{tpu_custom_call.1} parent=1 // pred_check
      %p31 = pneg %p30
    $region11: #{tpu_custom_call.1} parent=1 // pred_check_branch
      %33 = sbr.rel (%p31) target = $region13
    $region12: #{tpu_custom_call.1} parent=1 // pred_region
      %s34 = scalar_lea.smem [#allocation2], 0
      %35 = sst [smem:[%s34]] 0.0
      %s36 = scalar_lea.smem [#allocation3], 0
      %37 = sst [smem:[%s36]] 0.0
    $region13: #{tpu_custom_call.1} parent=1 // pred_fallthru
      _
    %v38 = vld [vmem:[#allocation4] sm:$0xff]
    %vm39 = vcmask 261120
    %v40 = vsel %vm39, %v38, -inf
    %41 = vmax.xlane.f32.xlu0 %v40
    %v42 = vpop.xlane.xlu0 %41
    %v43 = vsub.f32 %v38, %v42
    %v44 = vmul.f32 %v43, 1.442695
    %v45 = vpow.pop %v44
    %v46 = vsel %vm39, %v45, 0.0
    %47 = vadd.xlane.f32.xlu0 %v46
    %v48 = vpop.xlane.xlu0 %47
    %v49 = vrcp.pop %v48
    %v50 = vmul.f32 %v48, %v49
    %v51 = vsub.f32 1.0, %v50
    %v52 = vmul.f32 %v49, %v51
    %v53 = vadd.f32 %v49, %v52
    %vm54 = vweird.f32 %v48
    %vm55 = vweird.f32 %v49
    %vm56 = vmor %vm54, %vm55
    %v57 = vsel %vm56, %v49, %v53
    %v58 = vand.u32 2147483647, %v48
    %vm59 = vcmp.eq.f32.partialorder %v58, 8.507059e+37
    %v60 = vand.u32 %v48, 2147483648
    %v61 = vor.u32 1.1754944e-38, %v60
    %v62 = vsel %vm59, %v61, %v57
    %v63 = vmul.f32 1.0, %v62
    %v64 = vmul.f32 %v45, %v63
    %v65 = vmul.f32 %v64, 2.0
    %v66 = vsub.f32 1.0, %v65
    %v67 = vlog2.pop %v48
    %v68 = vmul.f32 %v67, 0.6931472
    %v69 = vmul.f32 %v45, %v43
    %v70 = vsel %vm39, %v69, 0.0
    %71 = vadd.xlane.f32.xlu0 %v70
    %v72 = vpop.xlane.xlu0 %71
    %v73 = vmul.f32 %v72, %v63
    %v74 = vsub.f32 %v68, %v73
    %v75 = vsub.f32 0.5, %v66
    %v76 = vmax.f32 %v75, 0.0
    %v77 = vmul.f32 %v74, 0.1
    %v78 = vadd.f32 %v76, %v77
    %vm79 = vcmp.lt.f32.partialorder %v66, 0.5
    %v80 = vsel %vm79, 1, 0
    %v81 = vcvt.s32.f32 %v80
    %s82 = sld [smem:[#allocation2]]
    %84 = vrot.lane.b32.xlu0 %v78, 97
    %v85 = vpop.permute.xlu0 %84
    %vm87 = vcmask 7168
    %v88 = vsel %vm87, %v85, 0.0
    %89 = vadd.xlane.f32.xlu0 %v88
    %v90 = vpop.xlane.xlu0 %89
    %v91 = vrot.slane %v90, 4
    %v92 = vadd.f32 %v90, %v91
    %v93 = vrot.slane %v92, 2
    %v94 = vadd.f32 %v92, %v93
    %v95 = vrot.slane %v94, 1
    %v96 = vadd.f32 %v94, %v95
    %s97 = vtos %v96
    %s98 = sadd.f32 %s82, %s97
    %s99 = scalar_lea.smem [#allocation2], 0
    %100 = sst [smem:[%s99]] %s98
    %s101 = sld [smem:[#allocation3]]
    %103 = vrot.lane.b32.xlu0 %v81, 97
    %v104 = vpop.permute.xlu0 %103
    %v106 = vsel %vm87, %v104, 0.0
    %107 = vadd.xlane.f32.xlu0 %v106
    %v108 = vpop.xlane.xlu0 %107
    %v109 = vrot.slane %v108, 4
    %v110 = vadd.f32 %v108, %v109
    %v111 = vrot.slane %v110, 2
    %v112 = vadd.f32 %v110, %v111
    %v113 = vrot.slane %v112, 1
    %v114 = vadd.f32 %v112, %v113
    %s115 = vtos %v114
    %s116 = sadd.f32 %s101, %s115
    %s117 = scalar_lea.smem [#allocation3], 0
    %118 = sst [smem:[%s117]] %s116
    // Predicated region
    $region14: #{tpu_custom_call.1} parent=1 // pred_check
      %p119 = pneg %p30
    $region15: #{tpu_custom_call.1} parent=1 // pred_check_branch
      %121 = sbr.rel (%p119) target = $region17
    $region16: #{tpu_custom_call.1} parent=1 // pred_region
      %s122 = sld [smem:[#allocation2]]
      %v123 = vstv %s122
      %124 = vst [vmem:[#allocation7] sm:$0xff] %v123
      %s125 = sld [smem:[#allocation3]]
      %v126 = vstv %s125
      %127 = vst [vmem:[#allocation8] sm:$0xff] %v126
    $region17: #{tpu_custom_call.1} parent=1 // pred_fallthru
      _
    // Predicated region
    $region18: #{tpu_custom_call.1} parent=1 // pred_check
      _
    $region19: #{tpu_custom_call.1} parent=1 // pred_check_branch
      %129 = sbr.rel (0) target = $region21
    $region20: #{tpu_custom_call.1} parent=1 // pred_region
      %131 = vsyncadd [#allocation6], 0
      %s133 = sshll.u32 [#allocation7], 4
      %s134 = int_to_ptr.vmem [resolvable:$true] %s133
      %s135 = sshll.u32 %s1, 4
      %s136 = int_to_ptr.hbm [resolvable:$true] %s135
      %138 = dma.vmem_to_hbm [thread:$0]  %s134, 128, %s136, [#allocation6]
    $region21: #{tpu_custom_call.1} parent=1 // pred_fallthru
      _
    // Predicated region
    $region22: #{tpu_custom_call.1} parent=1 // pred_check
      _
    $region23: #{tpu_custom_call.1} parent=1 // pred_check_branch
      %140 = sbr.rel (0) target = $region25
    $region24: #{tpu_custom_call.1} parent=1 // pred_region
      %142 = vsyncadd [#allocation9], 0
      %s144 = sshll.u32 [#allocation8], 4
      %s145 = int_to_ptr.vmem [resolvable:$true] %s144
      %s146 = sshll.u32 %s2, 4
      %s147 = int_to_ptr.hbm [resolvable:$true] %s146
      %149 = dma.vmem_to_hbm [thread:$0]  %s145, 128, %s147, [#allocation9]
    $region25: #{tpu_custom_call.1} parent=1 // pred_fallthru
      _
    // Predicated region
    $region26: #{tpu_custom_call.1} parent=1 // pred_check
      _
    $region27: #{tpu_custom_call.1} parent=1 // pred_check_branch
      %151 = sbr.rel (0) target = $region29
    $region28: #{tpu_custom_call.1} parent=1 // pred_region
      %153 = dma.done [#allocation6], 128
    $region29: #{tpu_custom_call.1} parent=1 // pred_fallthru
      _
    // Predicated region
    $region30: #{tpu_custom_call.1} parent=1 // pred_check
      _
    $region31: #{tpu_custom_call.1} parent=1 // pred_check_branch
      %155 = sbr.rel (0) target = $region33
    $region32: #{tpu_custom_call.1} parent=1 // pred_region
      %157 = dma.done [#allocation9], 128
    $region33: #{tpu_custom_call.1} parent=1 // pred_fallthru
      _
    %158 = vsyncpa [#allocation5], 1
    %159 = vsyncpa [#allocation6], 1
    %160 = vsyncpa [#allocation9], 1

</llo_original>
